<compile_context>
chip_gen: v6e
topology: v6e:2x2x1
jax: 0.10.0
libtpu: 0.0.40
codegen_flags: <defaults>
</compile_context>

<pallas_src>
from functools import partial

import jax
import jax.numpy as jnp
from jax.experimental import pallas as pl
from jax.experimental.pallas import tpu as pltpu


def _row_gather_kernel(tok_ref, cooc_hbm_ref, out_hbm_ref, sem):
    # tok_ref      : SMEM (1,) int32  -- scalar-prefetched last-token id
    # cooc_hbm_ref : HBM  (V, V) f32  -- full co-occurrence matrix (pl.ANY)
    # out_hbm_ref  : HBM  (1, V) f32  -- logits row destination (pl.ANY)
    # sem          : DMA semaphore
    tok = tok_ref[0]
    cp = pltpu.make_async_copy(
        cooc_hbm_ref.at[pl.ds(tok, 1), :],  # exactly one (1, V) row
        out_hbm_ref,
        sem,
    )
    cp.start()
    cp.wait()


@partial(jax.jit, static_argnames=())
def unigram_forward(cooc, decoder_input_ids):
    """Mirrors UnigramModel.forward(_, decoder_input_ids).

    cooc:               (V, V) float32
    decoder_input_ids:  (1, S) int32
    returns logits:     (1, 1, V) float32
    """
    assert decoder_input_ids.shape[0] == 1
    V = cooc.shape[0]

    # Guard against out-of-range token ids: manual DMA has no runtime bounds
    # check, so clamp to a valid row index (matches in-range behavior exactly).
    last_token = jnp.clip(
        decoder_input_ids[0, -1].astype(jnp.int32), 0, V - 1
    ).reshape((1,))

    logits_row = pl.pallas_call(
        _row_gather_kernel,
        out_shape=jax.ShapeDtypeStruct((1, V), cooc.dtype),
        grid_spec=pltpu.PrefetchScalarGridSpec(
            num_scalar_prefetch=1,
            grid=(1,),
            # Both operands stay in HBM; the kernel moves the row itself.
            in_specs=[pl.BlockSpec(memory_space=pl.ANY)],
            out_specs=pl.BlockSpec(memory_space=pl.ANY),
            scratch_shapes=[pltpu.SemaphoreType.DMA(())],
        ),
        compiler_params=pltpu.CompilerParams(
            dimension_semantics=("arbitrary",),
            has_side_effects=True,
        ),
    )(last_token, cooc)

    # reshape is metadata-only (no copy).
    return logits_row.reshape(1, 1, V)


if __name__ == "__main__":
    # Small, deterministic setup. The PyTorch module initializes `cooc` to
    # zeros; here we use deterministic random values so the gather is
    # verifiable, and a small vocab for speed.
    vocab_size = 512
    seq_len = 8

    key = jax.random.PRNGKey(0)
    k_cooc, k_ids = jax.random.split(key)

    cooc = jax.random.normal(k_cooc, (vocab_size, vocab_size), dtype=jnp.float32)
    decoder_input_ids = jax.random.randint(
        k_ids, (1, seq_len), 0, vocab_size, dtype=jnp.int32
    )

    logits = unigram_forward(cooc, decoder_input_ids)
    logits = jax.block_until_ready(logits)

    # Reference check (pure JAX).
    last_tok = int(decoder_input_ids[0, -1])
    ref = cooc[last_tok].reshape(1, 1, -1)
    assert logits.shape == (1, 1, vocab_size)
    assert jnp.allclose(logits, ref), "mismatch vs reference gather"

    print("KERNEL_OK")
</pallas_src>

<mosaic_0001>
module attributes {stable_mosaic.version = 11 : i64} {
  func.func @_row_gather_kernel(%arg0: i32, %arg1: memref<1xi32, #tpu.memory_space<smem>>, %arg2: memref<512x512xf32, #tpu.memory_space<any>>, %arg3: memref<1x512xf32, #tpu.memory_space<any>>, %arg4: memref<!tpu.dma_semaphore, #tpu.memory_space<semaphore_mem>>) attributes {dimension_semantics = [#tpu.dimension_semantics<arbitrary>], iteration_bounds = array<i64: 1>, scalar_prefetch = 1 : i64, scratch_operands = 1 : i64, tpu.core_type = #tpu.core_type<tc>, window_params = [{}, {}]} {
    %c0 = arith.constant 0 : index
    %0 = memref.load %arg1[%c0] : memref<1xi32, #tpu.memory_space<smem>>
    %c0_i32 = arith.constant 0 : i32
    %1 = tpu.memref_slice %arg2[%0, %c0_i32] : memref<512x512xf32, #tpu.memory_space<any>> -> memref<1x512xf32, #tpu.memory_space<any>>
    tpu.enqueue_dma source(%1 : memref<1x512xf32, #tpu.memory_space<any>>) target(%arg3 : memref<1x512xf32, #tpu.memory_space<any>>) target_semaphore(%arg4 : memref<!tpu.dma_semaphore, #tpu.memory_space<semaphore_mem>>)
    %c0_i32_0 = arith.constant 0 : i32
    %2 = tpu.memref_slice %arg2[%0, %c0_i32_0] : memref<512x512xf32, #tpu.memory_space<any>> -> memref<1x512xf32, #tpu.memory_space<any>>
    tpu.wait_dma2 semaphore(%arg4 : memref<!tpu.dma_semaphore, #tpu.memory_space<semaphore_mem>>) src(%2 : memref<1x512xf32, #tpu.memory_space<any>>) dst(%arg3 : memref<1x512xf32, #tpu.memory_space<any>>)
    return
  }
}

</mosaic_0001>

<llo_original>
// kernel: unigram_forward.1
$region0: #{unigram_forward.1}
  #allocation0 [shape = 'u32[]', space=smem, size = 0x4, offset = 0x4, fixed_abs, tag = 'smem constant byte address 0x4 - core index']
  #allocation1 [shape = 'u32[144,128]{1,0:T(1,128)}', space=vmem, size = 0x12000, scoped, tag = 'internal scratch']
  #allocation2 [shape = 's32[1]{0}', space=sflag, size = 0x4, scoped, tag = 'scratch operand']
  #allocation3 [shape = 's32[1]{0}', space=sflag, size = 0x4, scoped, tag = 'scoped memory for unigram_forward.1']
  #allocation4 [shape = 's32[1]{0:T(128)S(6)}', space=smem, size = 0x200, scoped, tag = 'prefetched SMEM operand 0']
  #allocation5 [shape = 's32[]', space=sflag, size = 0x4, offset = 0, fixed_abs, tag = 'sflag constant byte address 0x0 - dummy sync flag']
  %s0 = inlined_call_operand.<no memory space> [shape: s32[1], index: 0, kind: input, shape index: {}]
  %s1 = inlined_call_operand.hbm [shape: f32[512,512], index: 1, kind: input, shape index: {}]
  %s2 = inlined_call_operand.hbm [shape: f32[1,512], index: 2, kind: output, shape index: {}]
  %s3 = sld [smem:[#allocation0]]
  $region2: #{unigram_forward.1} parent=0
    _
  %s5 = ssub.s32 1, %s3
  %s6 = scalar_select 0, %s5, %s3
  %7 = sst [smem:[#allocation4]] %s0
  $region1: #{unigram_forward.1} parent=0
    #allocation6 [shape = 'u32[3]{0}', space=smem, size = 0xc, scoped, tag = 'DMA stride descriptor']
    %s8 = sld [smem:[#allocation4]]
    %s9 = sshrl.u32 %s8, 3
    %s10 = sand.u32 %s8, 7
    %s11 = smul.u32 %s9, 32
    %s12 = sadd.s32 %s10, %s11
    %s13 = smul.addr %s12, 16
    %s14 = scalar_lea.hbm %s1, %s13
    %s16 = sshll.u32 1, 14
    %s17 = sxor.u32 4294967295, %s16
    %21 = sst [smem:[#allocation6]] 128
    %s22 = scalar_lea.smem [#allocation6], 1
    %23 = sst [smem:[%s22]] 16
    %s24 = scalar_lea.smem [#allocation6], 2
    %25 = sst [smem:[%s24]] 1
    %27 = dma.general %s14, 64, %s2, [#allocation2], 131072, [#allocation6], 0, 0
    %s28 = smul.u32 1, 4
    %s29 = sshll.u32 %s28, 4
    %30 = dma.done [#allocation2], %s29
  %31 = vsyncmov [#allocation2]
  %s32 = vpop.sfrf %31
  %p33 = scmp.eq.s32.totalorder %s32, 0
  %p34 = pneg %p33
  %36 = shalt.err (%p34)

</llo_original>
